<compile_context>
chip_gen: v7x
topology: tpu7x:2x2x1
jax: 0.10.0
libtpu: 0.0.40
codegen_flags: <defaults>
</compile_context>

<pallas_src>
import functools
import math

import jax
import jax.numpy as jnp
from jax.experimental import pallas as pl
from jax.experimental.pallas import tpu as pltpu


def _gelu_tanh(x):
    # tanh-approximate GELU (only mul/add/tanh -> guaranteed Mosaic lowering).
    # TODO(synk): PyTorch nn.GELU() defaults to the exact erf form; the tanh
    # approximation deviates by at most ~3e-3 absolute.
    c = 0.7978845608028654  # sqrt(2 / pi)
    return 0.5 * x * (1.0 + jnp.tanh(c * (x + 0.044715 * x * x * x)))


def _ffn_kernel(x_ref, w1_ref, b1_ref, w2_ref, b2_ref, o_ref):
    # x_ref : (1, C_in, T)   spatial tile, lane-dense
    # w1_ref: (4C, C_in)     resident
    # b1_ref: (4C, 1)        resident
    # w2_ref: (C_out, 2C)    resident
    # b2_ref: (C_out, 1)     resident
    # o_ref : (1, C_out, T)
    x = x_ref[0]                                                     # (C_in, T)
    h = jnp.dot(w1_ref[...], x, preferred_element_type=jnp.float32)  # (4C, T)
    h = h + b1_ref[...]
    half = w2_ref.shape[1]                                           # 2C
    y1 = h[:half]
    y2 = h[half:]
    g = _gelu_tanh(y1) * y2                                          # (2C, T)
    y = jnp.dot(w2_ref[...], g, preferred_element_type=jnp.float32)  # (C_out, T)
    y = y + b2_ref[...]
    o_ref[0] = y.astype(o_ref.dtype)


@functools.partial(jax.jit, static_argnames=("tile_s",))
def _ffn_pallas(x3, w1, b1c, w2, b2c, tile_s):
    N, C_in, S = x3.shape
    Ch = w1.shape[0]          # 4C
    C_out = w2.shape[0]       # C

    if S <= tile_s:
        ts = S                        # full spatial extent -> always a legal block
    else:
        ts = (tile_s // 128) * 128    # lane-dense tile; partial last block is masked

    grid = (N, pl.cdiv(S, ts))

    return pl.pallas_call(
        _ffn_kernel,
        out_shape=jax.ShapeDtypeStruct((N, C_out, S), x3.dtype),
        grid_spec=pltpu.PrefetchScalarGridSpec(
            num_scalar_prefetch=0,
            grid=grid,
            in_specs=[
                pl.BlockSpec((1, C_in, ts), lambda n, s: (n, 0, s)),   # x tile
                pl.BlockSpec((Ch, C_in), lambda n, s: (0, 0)),         # W1 resident
                pl.BlockSpec((Ch, 1), lambda n, s: (0, 0)),            # b1 resident
                pl.BlockSpec((C_out, Ch // 2), lambda n, s: (0, 0)),   # W2 resident
                pl.BlockSpec((C_out, 1), lambda n, s: (0, 0)),         # b2 resident
            ],
            out_specs=pl.BlockSpec((1, C_out, ts), lambda n, s: (n, 0, s)),
        ),
        compiler_params=pltpu.CompilerParams(
            dimension_semantics=("parallel", "parallel"),
            vmem_limit_bytes=32 * 1024 * 1024,
        ),
    )(x3, w1, b1c, w2, b2c)


def ffn_forward(x, w1, b1, w2, b2, tile_s=4096):
    """FFN forward: h = W1 @ x + b1; y = W2 @ (GELU(h1) * h2) + b2.

    x : (N, C, D, H, W)   channels-first, like PyTorch Conv3d input
    w1: (4C, C)           squeezed Conv3d weight of linear1 (4C, C, 1, 1, 1)
    b1: (4C,)
    w2: (C, 2C)           squeezed Conv3d weight of linear2 (C, 2C, 1, 1, 1)
    b2: (C,)
    returns (N, C, D, H, W)
    """
    N, C, D, H, W = x.shape
    S = D * H * W
    x3 = x.reshape(N, C, S)                    # free reshape: same memory layout
    b1c = b1.reshape(w1.shape[0], 1)
    b2c = b2.reshape(w2.shape[0], 1)
    y3 = _ffn_pallas(x3, w1, b1c, w2, b2c, tile_s=tile_s)
    return y3.reshape(N, w2.shape[0], D, H, W)


if __name__ == "__main__":
    embedding_dim = 32
    expansion_factor = 4
    N, D, H, W = 2, 4, 8, 8                       # S = 256 spatial positions

    C_hidden = expansion_factor * embedding_dim   # 128
    C_half = C_hidden // 2                        # 64

    key = jax.random.PRNGKey(0)
    kx, kw1, kb1, kw2, kb2 = jax.random.split(key, 5)

    x = jax.random.normal(kx, (N, embedding_dim, D, H, W), dtype=jnp.float32)

    bound1 = 1.0 / math.sqrt(embedding_dim)
    w1 = jax.random.uniform(kw1, (C_hidden, embedding_dim),
                            minval=-bound1, maxval=bound1, dtype=jnp.float32)
    b1 = jax.random.uniform(kb1, (C_hidden,),
                            minval=-bound1, maxval=bound1, dtype=jnp.float32)
    bound2 = 1.0 / math.sqrt(C_half)
    w2 = jax.random.uniform(kw2, (embedding_dim, C_half),
                            minval=-bound2, maxval=bound2, dtype=jnp.float32)
    b2 = jax.random.uniform(kb2, (embedding_dim,),
                            minval=-bound2, maxval=bound2, dtype=jnp.float32)

    y = ffn_forward(x, w1, b1, w2, b2)
    jax.block_until_ready(y)

    # Plain-JAX reference of the same FFN (same tanh-approx GELU).
    xs = x.reshape(N, embedding_dim, -1)
    h_ref = jnp.einsum("hc,ncs->nhs", w1, xs, precision="highest") + b1[None, :, None]
    y1_ref, y2_ref = h_ref[:, :C_half], h_ref[:, C_half:]
    g_ref = _gelu_tanh(y1_ref) * y2_ref
    y_ref = jnp.einsum("oh,nhs->nos", w2, g_ref, precision="highest") + b2[None, :, None]
    y_ref = y_ref.reshape(N, embedding_dim, D, H, W)

    assert y.shape == (N, embedding_dim, D, H, W)
    assert jnp.allclose(y, y_ref, atol=2e-4, rtol=2e-4), (
        float(jnp.max(jnp.abs(y - y_ref))))
    print("KERNEL_OK")
</pallas_src>

<mosaic_0001>
module attributes {stable_mosaic.version = 11 : i64} {
  func.func @_ffn_kernel(%arg0: i32, %arg1: i32, %arg2: memref<1x32x256xf32, #tpu.memory_space<vmem>>, %arg3: memref<128x32xf32, #tpu.memory_space<vmem>>, %arg4: memref<128x1xf32, #tpu.memory_space<vmem>>, %arg5: memref<32x64xf32, #tpu.memory_space<vmem>>, %arg6: memref<32x1xf32, #tpu.memory_space<vmem>>, %arg7: memref<1x32x256xf32, #tpu.memory_space<vmem>>) attributes {dimension_semantics = [#tpu.dimension_semantics<parallel>, #tpu.dimension_semantics<parallel>], iteration_bounds = array<i64: 2, 1>, scalar_prefetch = 0 : i64, scratch_operands = 0 : i64, tpu.core_type = #tpu.core_type<tc>, window_params = [{transform_indices = @transform_0, window_bounds = array<i64: 1, 32, 256>}, {pipeline_mode = #tpu.pipeline_mode<synchronous>, transform_indices = @transform_1, window_bounds = array<i64: 128, 32>}, {pipeline_mode = #tpu.pipeline_mode<synchronous>, transform_indices = @transform_2, window_bounds = array<i64: 128, 1>}, {pipeline_mode = #tpu.pipeline_mode<synchronous>, transform_indices = @transform_3, window_bounds = array<i64: 32, 64>}, {pipeline_mode = #tpu.pipeline_mode<synchronous>, transform_indices = @transform_4, window_bounds = array<i64: 32, 1>}, {transform_indices = @transform_5, window_bounds = array<i64: 1, 32, 256>}]} {
    %c0 = arith.constant 0 : index
    %c0_0 = arith.constant 0 : index
    %c0_1 = arith.constant 0 : index
    %0 = vector.load %arg2[%c0, %c0_0, %c0_1] : memref<1x32x256xf32, #tpu.memory_space<vmem>>, vector<1x32x256xf32>
    %1 = vector.shape_cast %0 : vector<1x32x256xf32> to vector<32x256xf32>
    %c0_2 = arith.constant 0 : index
    %c0_3 = arith.constant 0 : index
    %2 = vector.load %arg3[%c0_2, %c0_3] : memref<128x32xf32, #tpu.memory_space<vmem>>, vector<128x32xf32>
    %cst = arith.constant dense<0.000000e+00> : vector<128x256xf32>
    %3 = tpu.matmul %2, %1, %cst {dimension_numbers = #tpu.dot_dimension_numbers<[1], [0], [0], [1], [0, 0, 1, 1], [], []>} : vector<128x32xf32>, vector<32x256xf32>, vector<128x256xf32> -> vector<128x256xf32>
    %c0_4 = arith.constant 0 : index
    %c0_5 = arith.constant 0 : index
    %4 = vector.load %arg4[%c0_4, %c0_5] : memref<128x1xf32, #tpu.memory_space<vmem>>, vector<128x1xf32>
    %5 = vector.broadcast %4 : vector<128x1xf32> to vector<128x256xf32>
    %6 = arith.addf %3, %5 : vector<128x256xf32>
    %7 = vector.extract_strided_slice %6 {offsets = [0, 0], sizes = [64, 256], strides = [1, 1]} : vector<128x256xf32> to vector<64x256xf32>
    %8 = vector.extract_strided_slice %6 {offsets = [64, 0], sizes = [64, 256], strides = [1, 1]} : vector<128x256xf32> to vector<64x256xf32>
    %cst_6 = arith.constant 5.000000e-01 : f32
    %9 = vector.broadcast %cst_6 : f32 to vector<64x256xf32>
    %10 = arith.mulf %9, %7 : vector<64x256xf32>
    %cst_7 = arith.constant 4.471500e-02 : f32
    %11 = vector.broadcast %cst_7 : f32 to vector<64x256xf32>
    %12 = arith.mulf %11, %7 : vector<64x256xf32>
    %13 = arith.mulf %12, %7 : vector<64x256xf32>
    %14 = arith.mulf %13, %7 : vector<64x256xf32>
    %15 = arith.addf %7, %14 : vector<64x256xf32>
    %cst_8 = arith.constant 0.797884583 : f32
    %16 = vector.broadcast %cst_8 : f32 to vector<64x256xf32>
    %17 = arith.mulf %16, %15 : vector<64x256xf32>
    %18 = math.tanh %17 : vector<64x256xf32>
    %cst_9 = arith.constant 1.000000e+00 : f32
    %19 = vector.broadcast %cst_9 : f32 to vector<64x256xf32>
    %20 = arith.addf %19, %18 : vector<64x256xf32>
    %21 = arith.mulf %10, %20 : vector<64x256xf32>
    %22 = arith.mulf %21, %8 : vector<64x256xf32>
    %c0_10 = arith.constant 0 : index
    %c0_11 = arith.constant 0 : index
    %23 = vector.load %arg5[%c0_10, %c0_11] : memref<32x64xf32, #tpu.memory_space<vmem>>, vector<32x64xf32>
    %cst_12 = arith.constant dense<0.000000e+00> : vector<32x256xf32>
    %24 = tpu.matmul %23, %22, %cst_12 {dimension_numbers = #tpu.dot_dimension_numbers<[1], [0], [0], [1], [0, 0, 1, 1], [], []>} : vector<32x64xf32>, vector<64x256xf32>, vector<32x256xf32> -> vector<32x256xf32>
    %c0_13 = arith.constant 0 : index
    %c0_14 = arith.constant 0 : index
    %25 = vector.load %arg6[%c0_13, %c0_14] : memref<32x1xf32, #tpu.memory_space<vmem>>, vector<32x1xf32>
    %26 = vector.broadcast %25 : vector<32x1xf32> to vector<32x256xf32>
    %27 = arith.addf %24, %26 : vector<32x256xf32>
    %c0_15 = arith.constant 0 : index
    %c0_16 = arith.constant 0 : index
    %c0_17 = arith.constant 0 : index
    %28 = vector.load %arg7[%c0_15, %c0_16, %c0_17] : memref<1x32x256xf32, #tpu.memory_space<vmem>>, vector<1x32x256xf32>
    %29 = vector.shape_cast %28 : vector<1x32x256xf32> to vector<32x256xf32>
    %30 = vector.shape_cast %27 : vector<32x256xf32> to vector<1x32x256xf32>
    tpu.vector_store %arg7[%c0_15, %c0_16, %c0_17], %30 {strides = array<i32>} : memref<1x32x256xf32, #tpu.memory_space<vmem>>, vector<1x32x256xf32>,
    return
  }
  func.func @transform_0(%arg0: i32, %arg1: i32) -> (i32, i32, i32) {
    %c0_i32 = arith.constant 0 : i32
    %c0_i32_0 = arith.constant 0 : i32
    return %arg0, %c0_i32, %arg1 : i32, i32, i32
  }
  func.func @transform_1(%arg0: i32, %arg1: i32) -> (i32, i32) {
    %c0_i32 = arith.constant 0 : i32
    %c0_i32_0 = arith.constant 0 : i32
    %c0_i32_1 = arith.constant 0 : i32
    return %c0_i32, %c0_i32_0 : i32, i32
  }
  func.func @transform_2(%arg0: i32, %arg1: i32) -> (i32, i32) {
    %c0_i32 = arith.constant 0 : i32
    %c0_i32_0 = arith.constant 0 : i32
    %c0_i32_1 = arith.constant 0 : i32
    return %c0_i32, %c0_i32_0 : i32, i32
  }
  func.func @transform_3(%arg0: i32, %arg1: i32) -> (i32, i32) {
    %c0_i32 = arith.constant 0 : i32
    %c0_i32_0 = arith.constant 0 : i32
    %c0_i32_1 = arith.constant 0 : i32
    return %c0_i32, %c0_i32_0 : i32, i32
  }
  func.func @transform_4(%arg0: i32, %arg1: i32) -> (i32, i32) {
    %c0_i32 = arith.constant 0 : i32
    %c0_i32_0 = arith.constant 0 : i32
    %c0_i32_1 = arith.constant 0 : i32
    return %c0_i32, %c0_i32_0 : i32, i32
  }
  func.func @transform_5(%arg0: i32, %arg1: i32) -> (i32, i32, i32) {
    %c0_i32 = arith.constant 0 : i32
    %c0_i32_0 = arith.constant 0 : i32
    return %arg0, %c0_i32, %arg1 : i32, i32, i32
  }
}

</mosaic_0001>

<llo_original>
// kernel: _ffn_pallas.1
$region0: #{_ffn_pallas.1}
  #allocation0 [shape = 'u32[]', space=smem, size = 0x4, offset = 0x4, fixed_abs, tag = 'smem constant byte address 0x4 - core index']
  #allocation1 [shape = 'u32[144,128]{1,0:T(1,128)}', space=vmem, size = 0x12000, scoped, tag = 'internal scratch']
  %s0 = inlined_call_operand.vmem [shape: f32[2,32,256], index: 0, kind: input, shape index: {}]
  %s1 = inlined_call_operand.vmem [shape: f32[128,32], index: 1, kind: input, shape index: {}]
  %s2 = inlined_call_operand.vmem [shape: f32[128,1], index: 2, kind: input, shape index: {}]
  %s3 = inlined_call_operand.vmem [shape: f32[32,64], index: 3, kind: input, shape index: {}]
  %s4 = inlined_call_operand.vmem [shape: f32[32,1], index: 4, kind: input, shape index: {}]
  %s5 = inlined_call_operand.hbm [shape: f32[2,32,256], index: 5, kind: output, shape index: {}]
  %s6 = sld [smem:[#allocation0]]
  $region53: #{_ffn_pallas.1} parent=0
    _
  %s8 = ssub.s32 1, %s6
  %s9 = scalar_select 0, %s8, %s6
  $region1: #{_ffn_pallas.1} parent=0
    #allocation2 [shape = 'u8[65536]{0}', space=vmem, size = 0x10000, scoped, tag = 'output window, operand 0']
    #allocation3 [shape = 's32[2]{0}', space=sflag, size = 0x8, scoped, tag = 'scoped memory for _ffn_pallas.1']
    %10 = vsyncpa [#allocation3], 0
    %s11 = scalar_lea.sflag [#allocation3], 1
    %12 = vsyncpa %s11, 0
    loop: start=0, step=1, limit=4
    $region2: #{_ffn_pallas.1} parent=1 // loop_pre_header
      _
    $region3: #{_ffn_pallas.1} parent=1 // loop_header
      %s14 = sphi 0, %s18
      %p15 = scmp.ge.s32.totalorder %s14, 4
      %s21 = sphi 0, %s33
      %s22 = sphi 0, %s29
      %s23 = sphi 0, %s21
      %s24 = sphi 0, %s22
      %s25 = sphi 0, %s23
      %s26 = sphi 0, %s24
      %s38 = sphi 0, %s40
      %s41 = sphi 0, %s38
      %s42 = sphi 0, %s41
      %s58 = sphi 0, %s42
      %s62 = sphi 0, %s62
      %s64 = sphi 0, %s62
      %s65 = sphi 0, %s64
      %s79 = sphi 0, %s65
      %s83 = sphi 0, %s83
      %s85 = sphi 0, %s83
      %s86 = sphi 0, %s85
      %s100 = sphi 0, %s86
      %s104 = sphi 0, %s104
      %s106 = sphi 0, %s104
      %s107 = sphi 0, %s106
      %s121 = sphi 0, %s107
      %s125 = sphi 0, %s125
      %s127 = sphi 0, %s125
      %s128 = sphi 0, %s127
      %s142 = sphi 0, %s128
      %s150 = sphi 0, %s152
      %s153 = sphi 0, %s150
      %s154 = sphi 0, %s153
      %s170 = sphi 0, %s154
    $region4: #{_ffn_pallas.1} parent=1 // loop_header_branch
      %17 = sbr.rel (%p15) target = $region8
    $region5: #{_ffn_pallas.1} parent=1 // loop_body
      %s19 = ssub.s32 %s14, 1
      %s20 = ssub.s32 %s14, 2
      %s27 = sadd.s32 1, %s22
      %p28 = scmp.ge.s32.totalorder %s27, 1
      %s29 = scalar_select %p28, 0, %s27
      %s30 = sadd.s32 1, %s21
      %s31 = scalar_select %p28, %s30, %s21
      %p32 = scmp.ge.s32.totalorder %s31, 2
      %s33 = scalar_select %p32, 0, %s31
      %s34 = ssub.s32 %s21, %s33
      %s35 = ssub.s32 %s22, %s29
      %s36 = sor.u32 %s34, %s35
      %p37 = scmp.eq.s32.totalorder %s36, 0
      %s39 = sadd.s32 %s38, 1
      %s40 = scalar_select %p37, %s38, %s39
      %p43 = pneg %p37
      %p44 = scmp.eq.s32.totalorder %s14, 1
      %p45 = por %p43, %p44
      %p46 = scmp.ne.s32.totalorder %s38, %s41
      %p47 = scmp.eq.s32.totalorder %s14, 0
      %p48 = por %p46, %p47
      %p49 = scmp.ne.s32.totalorder %s38, %s41
      %p50 = scmp.eq.s32.totalorder %s19, 1
      %p51 = por %p49, %p50
      %p52 = scmp.ne.s32.totalorder %s41, %s42
      %p53 = scmp.eq.s32.totalorder %s19, 0
      %p54 = por %p52, %p53
      %p55 = scmp.ne.s32.totalorder %s41, %s42
      %p56 = scmp.eq.s32.totalorder %s20, 1
      %p57 = por %p55, %p56
      %p59 = scmp.ne.s32.totalorder %s42, %s58
      %p60 = scmp.eq.s32.totalorder %s20, 0
      %p61 = por %p59, %p60
      %s63 = sadd.s32 %s62, 1
      %p66 = scmp.eq.s32.totalorder %s14, 1
      %p67 = scmp.ne.s32.totalorder %s62, %s64
      %p68 = scmp.eq.s32.totalorder %s14, 0
      %p69 = por %p67, %p68
      %p70 = scmp.ne.s32.totalorder %s62, %s64
      %p71 = scmp.eq.s32.totalorder %s19, 1
      %p72 = por %p70, %p71
      %p73 = scmp.ne.s32.totalorder %s64, %s65
      %p74 = scmp.eq.s32.totalorder %s19, 0
      %p75 = por %p73, %p74
      %p76 = scmp.ne.s32.totalorder %s64, %s65
      %p77 = scmp.eq.s32.totalorder %s20, 1
      %p78 = por %p76, %p77
      %p80 = scmp.ne.s32.totalorder %s65, %s79
      %p81 = scmp.eq.s32.totalorder %s20, 0
      %p82 = por %p80, %p81
      %s84 = sadd.s32 %s83, 1
      %p87 = scmp.eq.s32.totalorder %s14, 1
      %p88 = scmp.ne.s32.totalorder %s83, %s85
      %p89 = scmp.eq.s32.totalorder %s14, 0
      %p90 = por %p88, %p89
      %p91 = scmp.ne.s32.totalorder %s83, %s85
      %p92 = scmp.eq.s32.totalorder %s19, 1
      %p93 = por %p91, %p92
      %p94 = scmp.ne.s32.totalorder %s85, %s86
      %p95 = scmp.eq.s32.totalorder %s19, 0
      %p96 = por %p94, %p95
      %p97 = scmp.ne.s32.totalorder %s85, %s86
      %p98 = scmp.eq.s32.totalorder %s20, 1
      %p99 = por %p97, %p98
      %p101 = scmp.ne.s32.totalorder %s86, %s100
      %p102 = scmp.eq.s32.totalorder %s20, 0
      %p103 = por %p101, %p102
      %s105 = sadd.s32 %s104, 1
      %p108 = scmp.eq.s32.totalorder %s14, 1
      %p109 = scmp.ne.s32.totalorder %s104, %s106
      %p110 = scmp.eq.s32.totalorder %s14, 0
      %p111 = por %p109, %p110
      %p112 = scmp.ne.s32.totalorder %s104, %s106
      %p113 = scmp.eq.s32.totalorder %s19, 1
      %p114 = por %p112, %p113
      %p115 = scmp.ne.s32.totalorder %s106, %s107
      %p116 = scmp.eq.s32.totalorder %s19, 0
      %p117 = por %p115, %p116
      %p118 = scmp.ne.s32.totalorder %s106, %s107
      %p119 = scmp.eq.s32.totalorder %s20, 1
      %p120 = por %p118, %p119
      %p122 = scmp.ne.s32.totalorder %s107, %s121
      %p123 = scmp.eq.s32.totalorder %s20, 0
      %p124 = por %p122, %p123
      %s126 = sadd.s32 %s125, 1
      %p129 = scmp.eq.s32.totalorder %s14, 1
      %p130 = scmp.ne.s32.totalorder %s125, %s127
      %p131 = scmp.eq.s32.totalorder %s14, 0
      %p132 = por %p130, %p131
      %p133 = scmp.ne.s32.totalorder %s125, %s127
      %p134 = scmp.eq.s32.totalorder %s19, 1
      %p135 = por %p133, %p134
      %p136 = scmp.ne.s32.totalorder %s127, %s128
      %p137 = scmp.eq.s32.totalorder %s19, 0
      %p138 = por %p136, %p137
      %p139 = scmp.ne.s32.totalorder %s127, %s128
      %p140 = scmp.eq.s32.totalorder %s20, 1
      %p141 = por %p139, %p140
      %p143 = scmp.ne.s32.totalorder %s128, %s142
      %p144 = scmp.eq.s32.totalorder %s20, 0
      %p145 = por %p143, %p144
      %s146 = ssub.s32 %s21, %s33
      %s147 = ssub.s32 %s22, %s29
      %s148 = sor.u32 %s146, %s147
      %p149 = scmp.eq.s32.totalorder %s148, 0
      %s151 = sadd.s32 %s150, 1
      %s152 = scalar_select %p149, %s150, %s151
      %p155 = pneg %p149
      %p156 = scmp.eq.s32.totalorder %s14, 1
      %p157 = por %p155, %p156
      %p158 = scmp.ne.s32.totalorder %s150, %s153
      %p159 = scmp.eq.s32.totalorder %s14, 0
      %p160 = por %p158, %p159
      %p161 = scmp.ne.s32.totalorder %s150, %s153
      %p162 = scmp.eq.s32.totalorder %s19, 1
      %p163 = por %p161, %p162
      %p164 = scmp.ne.s32.totalorder %s153, %s154
      %p165 = scmp.eq.s32.totalorder %s19, 0
      %p166 = por %p164, %p165
      %p167 = scmp.ne.s32.totalorder %s153, %s154
      %p168 = scmp.eq.s32.totalorder %s20, 1
      %p169 = por %p167, %p168
      %p171 = scmp.ne.s32.totalorder %s154, %s170
      %p172 = scmp.eq.s32.totalorder %s20, 0
      %p173 = por %p171, %p172
      %p174 = scmp.le.s32.totalorder 1, %s14
      %p175 = scmp.lt.s32.totalorder %s14, 3
      %p176 = pnand %p174, %p175
      %p177 = pneg %p176
      // Predicated region
      $region9: #{_ffn_pallas.1} parent=5 // pred_check
        _
      $region10: #{_ffn_pallas.1} parent=5 // pred_check_branch
        %179 = sbr.rel (%p176) target = $region12
      $region11: #{_ffn_pallas.1} parent=5 // pred_region
        %s180 = ssub.s32 %s14, 1
        // Predicated region
        $region13: #{_ffn_pallas.1} parent=11 // pred_check
          %p181 = pneg %p75
        $region14: #{_ffn_pallas.1} parent=11 // pred_check_branch
          %183 = sbr.rel (%p181) target = $region16
        $region15: #{_ffn_pallas.1} parent=11 // pred_region
          _
        $region16: #{_ffn_pallas.1} parent=11 // pred_fallthru
          _
        // Predicated region
        $region17: #{_ffn_pallas.1} parent=11 // pred_check
          %p184 = pneg %p96
        $region18: #{_ffn_pallas.1} parent=11 // pred_check_branch
          %186 = sbr.rel (%p184) target = $region20
        $region19: #{_ffn_pallas.1} parent=11 // pred_region
          _
        $region20: #{_ffn_pallas.1} parent=11 // pred_fallthru
          _
        // Predicated region
        $region21: #{_ffn_pallas.1} parent=11 // pred_check
          %p187 = pneg %p117
        $region22: #{_ffn_pallas.1} parent=11 // pred_check_branch
          %189 = sbr.rel (%p187) target = $region24
        $region23: #{_ffn_pallas.1} parent=11 // pred_region
          _
        $region24: #{_ffn_pallas.1} parent=11 // pred_fallthru
          _
        // Predicated region
        $region25: #{_ffn_pallas.1} parent=11 // pred_check
          %p190 = pneg %p138
        $region26: #{_ffn_pallas.1} parent=11 // pred_check_branch
          %192 = sbr.rel (%p190) target = $region28
        $region27: #{_ffn_pallas.1} parent=11 // pred_region
          _
        $region28: #{_ffn_pallas.1} parent=11 // pred_fallthru
          _
      $region12: #{_ffn_pallas.1} parent=5 // pred_fallthru
        _
      %p193 = scmp.lt.s32.totalorder %s14, 2
      // Predicated region
      $region29: #{_ffn_pallas.1} parent=5 // pred_check
        %p194 = pneg %p193
      $region30: #{_ffn_pallas.1} parent=5 // pred_check_branch
        %196 = sbr.rel (%p194) target = $region32
      $region31: #{_ffn_pallas.1} parent=5 // pred_region
        // Predicated region
        $region33: #{_ffn_pallas.1} parent=31 // pred_check
          %p197 = pneg %p48
        $region34: #{_ffn_pallas.1} parent=31 // pred_check_branch
          %199 = sbr.rel (%p197) target = $region36
        $region35: #{_ffn_pallas.1} parent=31 // pred_region
          %s200 = smul.u32 2, %s22
          %p201 = scmp.lt.s32.totalorder %s21, 1
          %s202 = scalar_select %p201, %s21, 1
          %p203 = scmp.lt.s32.totalorder %s200, 1
          %s204 = scalar_select %p203, %s200, 1
          %s205 = smul.addr %s202, 8
          %s206 = sadd.s32 %s204, %s205
          %s207 = smul.addr %s206, 8
          %s208 = scalar_lea.vmem %s0, %s207
          %s209 = smul.u32 2, %s22
        $region36: #{_ffn_pallas.1} parent=31 // pred_fallthru
          _
      $region32: #{_ffn_pallas.1} parent=5 // pred_fallthru
        _
      %p210 = scmp.le.s32.totalorder 1, %s14
      %p211 = scmp.lt.s32.totalorder %s14, 3
      %p212 = pnand %p210, %p211
      %p213 = pneg %p212
      // Predicated region
      $region37: #{_ffn_pallas.1} parent=5 // pred_check
        _
      $region38: #{_ffn_pallas.1} parent=5 // pred_check_branch
        %215 = sbr.rel (%p212) target = $region40
      $region39: #{_ffn_pallas.1} parent=5 // pred_region
        %s216 = ssub.s32 %s14, 1
        %s217 = smul.u32 2, %s24
        %p218 = scmp.lt.s32.totalorder %s23, 1
        %s219 = scalar_select %p218, %s23, 1
        %p220 = scmp.lt.s32.totalorder %s217, 1
        %s221 = scalar_select %p220, %s217, 1
        %s222 = smul.addr %s219, 8
        %s223 = sadd.s32 %s221, %s222
        %s224 = smul.addr %s223, 8
        %s225 = scalar_lea.vmem %s0, %s224
        %p226 = pneg %p54
        %p227 = pneg %p51
        %p228 = pneg %p75
        %p229 = pneg %p72
        %p230 = pneg %p96
        %p231 = pneg %p93
        %p232 = pneg %p117
        %p233 = pneg %p114
        %p234 = pneg %p138
        %p235 = pneg %p135
        %p236 = pneg %p166
        %p237 = pneg %p163
        %s238 = sand.u32 %s153, 1
        %s239 = scalar_lea.sflag [#allocation3], %s238
        %s240 = sand.u32 %s153, 1
        %s241 = smul.addr %s240, 64
        %s242 = scalar_lea.vmem [#allocation2], %s241
        %s243 = smul.u32 2, %s24
        %p244 = scmp.lt.s32.totalorder %s23, 1
        %s245 = scalar_select %p244, %s23, 1
        %p246 = scmp.lt.s32.totalorder %s243, 1
        %s247 = scalar_select %p246, %s243, 1
        %s248 = smul.addr %s245, 8
        %s249 = sadd.s32 %s247, %s248
        %s250 = smul.addr %s249, 8
        %s251 = scalar_lea.vmem %s0, %s250
        %s252 = smul.u32 2, %s24
        %s253 = smul.u32 2, %s24
        %v254 = vld [vmem:[%s251] sm:$0xff]
        %v255 = vld [vmem:[%s251 + $0x8] sm:$0xff]
        %v256 = vld [vmem:[%s251 + $0x10] sm:$0xff]
        %v257 = vld [vmem:[%s251 + $0x18] sm:$0xff]
        %v258 = vld [vmem:[%s251 + $0x20] sm:$0xff]
        %v259 = vld [vmem:[%s251 + $0x28] sm:$0xff]
        %v260 = vld [vmem:[%s251 + $0x30] sm:$0xff]
        %v261 = vld [vmem:[%s251 + $0x38] sm:$0xff]
        %v262 = vld [vmem:[%s1] sm:$0xff]
        %v263 = vld [vmem:[%s1 + $0x8] sm:$0xff]
        %v264 = vld [vmem:[%s1 + $0x10] sm:$0xff]
        %v265 = vld [vmem:[%s1 + $0x18] sm:$0xff]
        %v266 = vld [vmem:[%s1 + $0x20] sm:$0xff]
        %v267 = vld [vmem:[%s1 + $0x28] sm:$0xff]
        %v268 = vld [vmem:[%s1 + $0x30] sm:$0xff]
        %v269 = vld [vmem:[%s1 + $0x38] sm:$0xff]
        %v270 = vld [vmem:[%s1 + $0x40] sm:$0xff]
        %v271 = vld [vmem:[%s1 + $0x48] sm:$0xff]
        %v272 = vld [vmem:[%s1 + $0x50] sm:$0xff]
        %v273 = vld [vmem:[%s1 + $0x58] sm:$0xff]
        %v274 = vld [vmem:[%s1 + $0x60] sm:$0xff]
        %v275 = vld [vmem:[%s1 + $0x68] sm:$0xff]
        %v276 = vld [vmem:[%s1 + $0x70] sm:$0xff]
        %v277 = vld [vmem:[%s1 + $0x78] sm:$0xff]
        %v278 = vld [vmem:[%s2] sm:$0xff]
        %v279 = vld [vmem:[%s2 + $0x8] sm:$0xff]
        %v280 = vld [vmem:[%s2 + $0x10] sm:$0xff]
        %v281 = vld [vmem:[%s2 + $0x18] sm:$0xff]
        %v282 = vld [vmem:[%s2 + $0x20] sm:$0xff]
        %v283 = vld [vmem:[%s2 + $0x28] sm:$0xff]
        %v284 = vld [vmem:[%s2 + $0x30] sm:$0xff]
        %v285 = vld [vmem:[%s2 + $0x38] sm:$0xff]
        %v286 = vld [vmem:[%s2 + $0x40] sm:$0xff]
        %v287 = vld [vmem:[%s2 + $0x48] sm:$0xff]
        %v288 = vld [vmem:[%s2 + $0x50] sm:$0xff]
        %v289 = vld [vmem:[%s2 + $0x58] sm:$0xff]
        %v290 = vld [vmem:[%s2 + $0x60] sm:$0xff]
        %v291 = vld [vmem:[%s2 + $0x68] sm:$0xff]
        %v292 = vld [vmem:[%s2 + $0x70] sm:$0xff]
        %v293 = vld [vmem:[%s2 + $0x78] sm:$0xff]
        %295 = vset.pattern.permute.xlu0 0
        %296 = vperm.xlu0 %295, %v278
        %v297 = vpop.permute.xlu0 %296
        %300 = vset.pattern.permute.xlu0 0
        %301 = vperm.xlu0 %300, %v279
        %v302 = vpop.permute.xlu0 %301
        %305 = vset.pattern.permute.xlu0 0
        %306 = vperm.xlu0 %305, %v280
        %v307 = vpop.permute.xlu0 %306
        %310 = vset.pattern.permute.xlu0 0
        %311 = vperm.xlu0 %310, %v281
        %v312 = vpop.permute.xlu0 %311
        %315 = vset.pattern.permute.xlu0 0
        %316 = vperm.xlu0 %315, %v282
        %v317 = vpop.permute.xlu0 %316
        %320 = vset.pattern.permute.xlu0 0
        %321 = vperm.xlu0 %320, %v283
        %v322 = vpop.permute.xlu0 %321
        %325 = vset.pattern.permute.xlu0 0
        %326 = vperm.xlu0 %325, %v284
        %v327 = vpop.permute.xlu0 %326
        %330 = vset.pattern.permute.xlu0 0
        %331 = vperm.xlu0 %330, %v285
        %v332 = vpop.permute.xlu0 %331
        %335 = vset.pattern.permute.xlu0 0
        %336 = vperm.xlu0 %335, %v286
        %v337 = vpop.permute.xlu0 %336
        %340 = vset.pattern.permute.xlu0 0
        %341 = vperm.xlu0 %340, %v287
        %v342 = vpop.permute.xlu0 %341
        %345 = vset.pattern.permute.xlu0 0
        %346 = vperm.xlu0 %345, %v288
        %v347 = vpop.permute.xlu0 %346
        %350 = vset.pattern.permute.xlu0 0
        %351 = vperm.xlu0 %350, %v289
        %v352 = vpop.permute.xlu0 %351
        %355 = vset.pattern.permute.xlu0 0
        %356 = vperm.xlu0 %355, %v290
        %v357 = vpop.permute.xlu0 %356
        %360 = vset.pattern.permute.xlu0 0
        %361 = vperm.xlu0 %360, %v291
        %v362 = vpop.permute.xlu0 %361
        %365 = vset.pattern.permute.xlu0 0
        %366 = vperm.xlu0 %365, %v292
        %v367 = vpop.permute.xlu0 %366
        %370 = vset.pattern.permute.xlu0 0
        %371 = vperm.xlu0 %370, %v293
        %v372 = vpop.permute.xlu0 %371
        %vm374 = vcmask 261120
        %v376 = vsel %vm374, %v262, 0
        %v379 = vsel %vm374, %v263, 0
        %v382 = vsel %vm374, %v264, 0
        %v385 = vsel %vm374, %v265, 0
        %v388 = vsel %vm374, %v266, 0
        %v391 = vsel %vm374, %v267, 0
        %v394 = vsel %vm374, %v268, 0
        %v397 = vsel %vm374, %v269, 0
        %v400 = vsel %vm374, %v270, 0
        %v403 = vsel %vm374, %v271, 0
        %v406 = vsel %vm374, %v272, 0
        %v409 = vsel %vm374, %v273, 0
        %v412 = vsel %vm374, %v274, 0
        %v415 = vsel %vm374, %v275, 0
        %v418 = vsel %vm374, %v276, 0
        %v421 = vsel %vm374, %v277, 0
        %423 = vmatprep.subr.mxu0 %v255
        %424 = vmatpush1.msra.mxu0 %v254
        %425 = vmatprep.subr.mxu0 %v257
        %426 = vmatpush1.msra.mxu0 %v256
        %427 = vmatprep.subr.mxu0 %v259
        %428 = vmatpush1.msra.mxu0 %v258
        %429 = vmatprep.subr.mxu0 %v261
        %430 = vmatpush1.msra.mxu0 %v260
        %431 = vmatprep.subr.mxu0 0.0
        %432 = vmatpush1.msra.mxu0 0.0
        %433 = vmatprep.subr.mxu0 0.0
        %434 = vmatpush1.msra.mxu0 0.0
        %435 = vmatprep.subr.mxu0 0.0
        %436 = vmatpush1.msra.mxu0 0.0
        %437 = vmatprep.subr.mxu0 0.0
        %438 = vmatpush1.msra.mxu0 0.0
        %439 = vmatprep.subr.mxu0 0.0
        %440 = vmatpush1.msra.mxu0 0.0
        %441 = vmatprep.subr.mxu0 0.0
        %442 = vmatpush1.msra.mxu0 0.0
        %443 = vmatprep.subr.mxu0 0.0
        %444 = vmatpush1.msra.mxu0 0.0
        %445 = vmatprep.subr.mxu0 0.0
        %446 = vmatpush1.msra.mxu0 0.0
        %447 = vmatprep.subr.mxu0 0.0
        %448 = vmatpush1.msra.mxu0 0.0
        %449 = vmatprep.subr.mxu0 0.0
        %450 = vmatpush1.msra.mxu0 0.0
        %451 = vmatprep.subr.mxu0 0.0
        %452 = vmatpush1.msra.mxu0 0.0
        %453 = vmatprep.subr.mxu0 0.0
        %454 = vmatpush1.msra.mxu0 0.0
        %455 = vmatprep.subr.mxu0 0.0
        %456 = vmatpush1.msra.mxu0 0.0
        %457 = vmatprep.subr.mxu0 0.0
        %458 = vmatpush1.msra.mxu0 0.0
        %459 = vmatprep.subr.mxu0 0.0
        %460 = vmatpush1.msra.mxu0 0.0
        %461 = vmatprep.subr.mxu0 0.0
        %462 = vmatpush1.msra.mxu0 0.0
        %463 = vmatprep.subr.mxu0 0.0
        %464 = vmatpush1.msra.mxu0 0.0
        %465 = vmatprep.subr.mxu0 0.0
        %466 = vmatpush1.msra.mxu0 0.0
        %467 = vmatprep.subr.mxu0 0.0
        %468 = vmatpush1.msra.mxu0 0.0
        %469 = vmatprep.subr.mxu0 0.0
        %470 = vmatpush1.msra.mxu0 0.0
        %471 = vmatprep.subr.mxu0 0.0
        %472 = vmatpush1.msra.mxu0 0.0
        %473 = vmatprep.subr.mxu0 0.0
        %474 = vmatpush1.msra.mxu0 0.0
        %475 = vmatprep.subr.mxu0 0.0
        %476 = vmatpush1.msra.mxu0 0.0
        %477 = vmatprep.subr.mxu0 0.0
        %478 = vmatpush1.msra.mxu0 0.0
        %479 = vmatprep.subr.mxu0 0.0
        %480 = vmatpush1.msra.mxu0 0.0
        %481 = vmatprep.subr.mxu0 0.0
        %482 = vmatpush1.msra.mxu0 0.0
        %483 = vmatprep.subr.mxu0 0.0
        %484 = vmatpush1.msra.mxu0 0.0
        %485 = vmatprep.subr.mxu0 0.0
        %486 = vmatpush1.msra.mxu0 0.0
        %487 = vmatprep.mubr.f32.mxu0 0.0
        %488 = vmatmul.mubr.f32.gmra.mrb[0].mxu0 %v376
        %v489 = vpop.f32.mrb[0].mxu0
        %v490 = vadd.f32 %v297, %v489
        %v491 = vpop.f32.mrb[0].mxu0
        %v492 = vadd.f32 %v297, %v491
        %493 = vmatprep.mubr.f32.mxu0 0.0
        %494 = vmatmul.mubr.f32.gmra.mrb[0].mxu0 %v379
        %v495 = vpop.f32.mrb[0].mxu0
        %v496 = vadd.f32 %v302, %v495
        %v497 = vpop.f32.mrb[0].mxu0
        %v498 = vadd.f32 %v302, %v497
        %499 = vmatprep.mubr.f32.mxu0 0.0
        %500 = vmatmul.mubr.f32.gmra.mrb[0].mxu0 %v382
        %v501 = vpop.f32.mrb[0].mxu0
        %v502 = vadd.f32 %v307, %v501
        %v503 = vpop.f32.mrb[0].mxu0
        %v504 = vadd.f32 %v307, %v503
        %505 = vmatprep.mubr.f32.mxu0 0.0
        %506 = vmatmul.mubr.f32.gmra.mrb[0].mxu0 %v385
        %v507 = vpop.f32.mrb[0].mxu0
        %v508 = vadd.f32 %v312, %v507
        %v509 = vpop.f32.mrb[0].mxu0
        %v510 = vadd.f32 %v312, %v509
        %511 = vmatprep.mubr.f32.mxu0 0.0
        %512 = vmatmul.mubr.f32.gmra.mrb[0].mxu0 %v388
        %v513 = vpop.f32.mrb[0].mxu0
        %v514 = vadd.f32 %v317, %v513
        %v515 = vpop.f32.mrb[0].mxu0
        %v516 = vadd.f32 %v317, %v515
        %517 = vmatprep.mubr.f32.mxu0 0.0
        %518 = vmatmul.mubr.f32.gmra.mrb[0].mxu0 %v391
        %v519 = vpop.f32.mrb[0].mxu0
        %v520 = vadd.f32 %v322, %v519
        %v521 = vpop.f32.mrb[0].mxu0
        %v522 = vadd.f32 %v322, %v521
        %523 = vmatprep.mubr.f32.mxu0 0.0
        %524 = vmatmul.mubr.f32.gmra.mrb[0].mxu0 %v394
        %v525 = vpop.f32.mrb[0].mxu0
        %v526 = vadd.f32 %v327, %v525
        %v527 = vpop.f32.mrb[0].mxu0
        %v528 = vadd.f32 %v327, %v527
        %529 = vmatprep.mubr.f32.mxu0 0.0
        %530 = vmatmul.mubr.f32.gmra.mrb[0].mxu0 %v397
        %v531 = vpop.f32.mrb[0].mxu0
        %v532 = vadd.f32 %v332, %v531
        %v533 = vpop.f32.mrb[0].mxu0
        %v534 = vadd.f32 %v332, %v533
        %535 = vmatprep.mubr.f32.mxu0 0.0
        %536 = vmatmul.mubr.f32.gmra.mrb[0].mxu0 %v400
        %v537 = vpop.f32.mrb[0].mxu0
        %v538 = vadd.f32 %v337, %v537
        %v539 = vpop.f32.mrb[0].mxu0
        %v540 = vadd.f32 %v337, %v539
        %541 = vmatprep.mubr.f32.mxu0 0.0
        %542 = vmatmul.mubr.f32.gmra.mrb[0].mxu0 %v403
        %v543 = vpop.f32.mrb[0].mxu0
        %v544 = vadd.f32 %v342, %v543
        %v545 = vpop.f32.mrb[0].mxu0
        %v546 = vadd.f32 %v342, %v545
        %547 = vmatprep.mubr.f32.mxu0 0.0
        %548 = vmatmul.mubr.f32.gmra.mrb[0].mxu0 %v406
        %v549 = vpop.f32.mrb[0].mxu0
        %v550 = vadd.f32 %v347, %v549
        %v551 = vpop.f32.mrb[0].mxu0
        %v552 = vadd.f32 %v347, %v551
        %553 = vmatprep.mubr.f32.mxu0 0.0
        %554 = vmatmul.mubr.f32.gmra.mrb[0].mxu0 %v409
        %v555 = vpop.f32.mrb[0].mxu0
        %v556 = vadd.f32 %v352, %v555
        %v557 = vpop.f32.mrb[0].mxu0
        %v558 = vadd.f32 %v352, %v557
        %559 = vmatprep.mubr.f32.mxu0 0.0
        %560 = vmatmul.mubr.f32.gmra.mrb[0].mxu0 %v412
        %v561 = vpop.f32.mrb[0].mxu0
        %v562 = vadd.f32 %v357, %v561
        %v563 = vpop.f32.mrb[0].mxu0
        %v564 = vadd.f32 %v357, %v563
        %565 = vmatprep.mubr.f32.mxu0 0.0
        %566 = vmatmul.mubr.f32.gmra.mrb[0].mxu0 %v415
        %v567 = vpop.f32.mrb[0].mxu0
        %v568 = vadd.f32 %v362, %v567
        %v569 = vpop.f32.mrb[0].mxu0
        %v570 = vadd.f32 %v362, %v569
        %571 = vmatprep.mubr.f32.mxu0 0.0
        %572 = vmatmul.mubr.f32.gmra.mrb[0].mxu0 %v418
        %v573 = vpop.f32.mrb[0].mxu0
        %v574 = vadd.f32 %v367, %v573
        %v575 = vpop.f32.mrb[0].mxu0
        %v576 = vadd.f32 %v367, %v575
        %577 = vmatprep.mubr.f32.mxu0 0.0
        %578 = vmatmul.mubr.f32.gmra.mrb[0].mxu0 %v421
        %v579 = vpop.f32.mrb[0].mxu0
        %v580 = vadd.f32 %v372, %v579
        %v581 = vpop.f32.mrb[0].mxu0
        %v582 = vadd.f32 %v372, %v581
        %583 = vdwg.mxu0
        %v584 = vmul.f32 %v490, 0.5
        %v585 = vmul.f32 %v492, 0.5
        %v586 = vmul.f32 %v496, 0.5
        %v587 = vmul.f32 %v498, 0.5
        %v588 = vmul.f32 %v502, 0.5
        %v589 = vmul.f32 %v504, 0.5
        %v590 = vmul.f32 %v508, 0.5
        %v591 = vmul.f32 %v510, 0.5
        %v592 = vmul.f32 %v514, 0.5
        %v593 = vmul.f32 %v516, 0.5
        %v594 = vmul.f32 %v520, 0.5
        %v595 = vmul.f32 %v522, 0.5
        %v596 = vmul.f32 %v526, 0.5
        %v597 = vmul.f32 %v528, 0.5
        %v598 = vmul.f32 %v532, 0.5
        %v599 = vmul.f32 %v534, 0.5
        %v600 = vmul.f32 %v490, 0.044715
        %v601 = vmul.f32 %v492, 0.044715
        %v602 = vmul.f32 %v496, 0.044715
        %v603 = vmul.f32 %v498, 0.044715
        %v604 = vmul.f32 %v502, 0.044715
        %v605 = vmul.f32 %v504, 0.044715
        %v606 = vmul.f32 %v508, 0.044715
        %v607 = vmul.f32 %v510, 0.044715
        %v608 = vmul.f32 %v514, 0.044715
        %v609 = vmul.f32 %v516, 0.044715
        %v610 = vmul.f32 %v520, 0.044715
        %v611 = vmul.f32 %v522, 0.044715
        %v612 = vmul.f32 %v526, 0.044715
        %v613 = vmul.f32 %v528, 0.044715
        %v614 = vmul.f32 %v532, 0.044715
        %v615 = vmul.f32 %v534, 0.044715
        %v616 = vmul.f32 %v600, %v490
        %v617 = vmul.f32 %v601, %v492
        %v618 = vmul.f32 %v602, %v496
        %v619 = vmul.f32 %v603, %v498
        %v620 = vmul.f32 %v604, %v502
        %v621 = vmul.f32 %v605, %v504
        %v622 = vmul.f32 %v606, %v508
        %v623 = vmul.f32 %v607, %v510
        %v624 = vmul.f32 %v608, %v514
        %v625 = vmul.f32 %v609, %v516
        %v626 = vmul.f32 %v610, %v520
        %v627 = vmul.f32 %v611, %v522
        %v628 = vmul.f32 %v612, %v526
        %v629 = vmul.f32 %v613, %v528
        %v630 = vmul.f32 %v614, %v532
        %v631 = vmul.f32 %v615, %v534
        %v632 = vmul.f32 %v616, %v490
        %v633 = vmul.f32 %v617, %v492
        %v634 = vmul.f32 %v618, %v496
        %v635 = vmul.f32 %v619, %v498
        %v636 = vmul.f32 %v620, %v502
        %v637 = vmul.f32 %v621, %v504
        %v638 = vmul.f32 %v622, %v508
        %v639 = vmul.f32 %v623, %v510
        %v640 = vmul.f32 %v624, %v514
        %v641 = vmul.f32 %v625, %v516
        %v642 = vmul.f32 %v626, %v520
        %v643 = vmul.f32 %v627, %v522
        %v644 = vmul.f32 %v628, %v526
        %v645 = vmul.f32 %v629, %v528
        %v646 = vmul.f32 %v630, %v532
        %v647 = vmul.f32 %v631, %v534
        %v648 = vadd.f32 %v490, %v632
        %v649 = vadd.f32 %v492, %v633
        %v650 = vadd.f32 %v496, %v634
        %v651 = vadd.f32 %v498, %v635
        %v652 = vadd.f32 %v502, %v636
        %v653 = vadd.f32 %v504, %v637
        %v654 = vadd.f32 %v508, %v638
        %v655 = vadd.f32 %v510, %v639
        %v656 = vadd.f32 %v514, %v640
        %v657 = vadd.f32 %v516, %v641
        %v658 = vadd.f32 %v520, %v642
        %v659 = vadd.f32 %v522, %v643
        %v660 = vadd.f32 %v526, %v644
        %v661 = vadd.f32 %v528, %v645
        %v662 = vadd.f32 %v532, %v646
        %v663 = vadd.f32 %v534, %v647
        %v664 = vmul.f32 %v648, 0.7978846
        %v665 = vmul.f32 %v649, 0.7978846
        %v666 = vmul.f32 %v650, 0.7978846
        %v667 = vmul.f32 %v651, 0.7978846
        %v668 = vmul.f32 %v652, 0.7978846
        %v669 = vmul.f32 %v653, 0.7978846
        %v670 = vmul.f32 %v654, 0.7978846
        %v671 = vmul.f32 %v655, 0.7978846
        %v672 = vmul.f32 %v656, 0.7978846
        %v673 = vmul.f32 %v657, 0.7978846
        %v674 = vmul.f32 %v658, 0.7978846
        %v675 = vmul.f32 %v659, 0.7978846
        %v676 = vmul.f32 %v660, 0.7978846
        %v677 = vmul.f32 %v661, 0.7978846
        %v678 = vmul.f32 %v662, 0.7978846
        %v679 = vmul.f32 %v663, 0.7978846
        %v680 = vtanh.pop %v664
        %v681 = vtanh.pop %v665
        %v682 = vtanh.pop %v666
        %v683 = vtanh.pop %v667
        %v684 = vtanh.pop %v668
        %v685 = vtanh.pop %v669
        %v686 = vtanh.pop %v670
        %v687 = vtanh.pop %v671
        %v688 = vtanh.pop %v672
        %v689 = vtanh.pop %v673
        %v690 = vtanh.pop %v674
        %v691 = vtanh.pop %v675
        %v692 = vtanh.pop %v676
        %v693 = vtanh.pop %v677
        %v694 = vtanh.pop %v678
        %v695 = vtanh.pop %v679
        %v696 = vadd.f32 %v680, 1.0
        %v697 = vadd.f32 %v681, 1.0
        %v698 = vadd.f32 %v682, 1.0
        %v699 = vadd.f32 %v683, 1.0
        %v700 = vadd.f32 %v684, 1.0
        %v701 = vadd.f32 %v685, 1.0
        %v702 = vadd.f32 %v686, 1.0
        %v703 = vadd.f32 %v687, 1.0
        %v704 = vadd.f32 %v688, 1.0
        %v705 = vadd.f32 %v689, 1.0
        %v706 = vadd.f32 %v690, 1.0
        %v707 = vadd.f32 %v691, 1.0
        %v708 = vadd.f32 %v692, 1.0
        %v709 = vadd.f32 %v693, 1.0
        %v710 = vadd.f32 %v694, 1.0
        %v711 = vadd.f32 %v695, 1.0
        %v712 = vmul.f32 %v584, %v696
        %v713 = vmul.f32 %v585, %v697
        %v714 = vmul.f32 %v586, %v698
        %v715 = vmul.f32 %v587, %v699
        %v716 = vmul.f32 %v588, %v700
        %v717 = vmul.f32 %v589, %v701
        %v718 = vmul.f32 %v590, %v702
        %v719 = vmul.f32 %v591, %v703
        %v720 = vmul.f32 %v592, %v704
        %v721 = vmul.f32 %v593, %v705
        %v722 = vmul.f32 %v594, %v706
        %v723 = vmul.f32 %v595, %v707
        %v724 = vmul.f32 %v596, %v708
        %v725 = vmul.f32 %v597, %v709
        %v726 = vmul.f32 %v598, %v710
        %v727 = vmul.f32 %v599, %v711
        %v728 = vmul.f32 %v712, %v538
        %v729 = vmul.f32 %v713, %v540
        %v730 = vmul.f32 %v714, %v544
        %v731 = vmul.f32 %v715, %v546
        %v732 = vmul.f32 %v716, %v550
        %v733 = vmul.f32 %v717, %v552
        %v734 = vmul.f32 %v718, %v556
        %v735 = vmul.f32 %v719, %v558
        %v736 = vmul.f32 %v720, %v562
        %v737 = vmul.f32 %v721, %v564
        %v738 = vmul.f32 %v722, %v568
        %v739 = vmul.f32 %v723, %v570
        %v740 = vmul.f32 %v724, %v574
        %v741 = vmul.f32 %v725, %v576
        %v742 = vmul.f32 %v726, %v580
        %v743 = vmul.f32 %v727, %v582
        %v744 = vld [vmem:[%s3] sm:$0xff]
        %v745 = vld [vmem:[%s3 + $0x8] sm:$0xff]
        %v746 = vld [vmem:[%s3 + $0x10] sm:$0xff]
        %v747 = vld [vmem:[%s3 + $0x18] sm:$0xff]
        %v748 = vld [vmem:[%s4] sm:$0xff]
        %v749 = vld [vmem:[%s4 + $0x8] sm:$0xff]
        %v750 = vld [vmem:[%s4 + $0x10] sm:$0xff]
        %v751 = vld [vmem:[%s4 + $0x18] sm:$0xff]
        %753 = vset.pattern.permute.xlu0 0
        %754 = vperm.xlu0 %753, %v748
        %v755 = vpop.permute.xlu0 %754
        %758 = vset.pattern.permute.xlu0 0
        %759 = vperm.xlu0 %758, %v749
        %v760 = vpop.permute.xlu0 %759
        %763 = vset.pattern.permute.xlu0 0
        %764 = vperm.xlu0 %763, %v750
        %v765 = vpop.permute.xlu0 %764
        %768 = vset.pattern.permute.xlu0 0
        %769 = vperm.xlu0 %768, %v751
        %v770 = vpop.permute.xlu0 %769
        %vm772 = vcmask 523264
        %v774 = vsel %vm772, %v744, 0
        %v777 = vsel %vm772, %v745, 0
        %v780 = vsel %vm772, %v746, 0
        %v783 = vsel %vm772, %v747, 0
        %785 = vmatprep.subr.mxu0 %v729
        %786 = vmatpush1.msra.mxu0 %v728
        %787 = vmatprep.subr.mxu0 %v731
        %788 = vmatpush1.msra.mxu0 %v730
        %789 = vmatprep.subr.mxu0 %v733
        %790 = vmatpush1.msra.mxu0 %v732
        %791 = vmatprep.subr.mxu0 %v735
        %792 = vmatpush1.msra.mxu0 %v734
        %793 = vmatprep.subr.mxu0 %v737
        %794 = vmatpush1.msra.mxu0 %v736
        %795 = vmatprep.subr.mxu0 %v739
        %796 = vmatpush1.msra.mxu0 %v738
        %797 = vmatprep.subr.mxu0 %v741
        %798 = vmatpush1.msra.mxu0 %v740
        %799 = vmatprep.subr.mxu0 %v743
        %800 = vmatpush1.msra.mxu0 %v742
        %801 = vmatprep.subr.mxu0 0.0
        %802 = vmatpush1.msra.mxu0 0.0
        %803 = vmatprep.subr.mxu0 0.0
        %804 = vmatpush1.msra.mxu0 0.0
        %805 = vmatprep.subr.mxu0 0.0
        %806 = vmatpush1.msra.mxu0 0.0
        %807 = vmatprep.subr.mxu0 0.0
        %808 = vmatpush1.msra.mxu0 0.0
        %809 = vmatprep.subr.mxu0 0.0
        %810 = vmatpush1.msra.mxu0 0.0
        %811 = vmatprep.subr.mxu0 0.0
        %812 = vmatpush1.msra.mxu0 0.0
        %813 = vmatprep.subr.mxu0 0.0
        %814 = vmatpush1.msra.mxu0 0.0
        %815 = vmatprep.subr.mxu0 0.0
        %816 = vmatpush1.msra.mxu0 0.0
        %817 = vmatprep.subr.mxu0 0.0
        %818 = vmatpush1.msra.mxu0 0.0
        %819 = vmatprep.subr.mxu0 0.0
        %820 = vmatpush1.msra.mxu0 0.0
        %821 = vmatprep.subr.mxu0 0.0
        %822 = vmatpush1.msra.mxu0 0.0
        %823 = vmatprep.subr.mxu0 0.0
        %824 = vmatpush1.msra.mxu0 0.0
        %825 = vmatprep.subr.mxu0 0.0
        %826 = vmatpush1.msra.mxu0 0.0
        %827 = vmatprep.subr.mxu0 0.0
        %828 = vmatpush1.msra.mxu0 0.0
        %829 = vmatprep.subr.mxu0 0.0
        %830 = vmatpush1.msra.mxu0 0.0
        %831 = vmatprep.subr.mxu0 0.0
        %832 = vmatpush1.msra.mxu0 0.0
        %833 = vmatprep.subr.mxu0 0.0
        %834 = vmatpush1.msra.mxu0 0.0
        %835 = vmatprep.subr.mxu0 0.0
        %836 = vmatpush1.msra.mxu0 0.0
        %837 = vmatprep.subr.mxu0 0.0
        %838 = vmatpush1.msra.mxu0 0.0
        %839 = vmatprep.subr.mxu0 0.0
        %840 = vmatpush1.msra.mxu0 0.0
        %841 = vmatprep.subr.mxu0 0.0
        %842 = vmatpush1.msra.mxu0 0.0
        %843 = vmatprep.subr.mxu0 0.0
        %844 = vmatpush1.msra.mxu0 0.0
        %845 = vmatprep.subr.mxu0 0.0
        %846 = vmatpush1.msra.mxu0 0.0
        %847 = vmatprep.subr.mxu0 0.0
        %848 = vmatpush1.msra.mxu0 0.0
        %849 = vmatprep.mubr.f32.mxu0 0.0
        %850 = vmatmul.mubr.f32.gmra.mrb[0].mxu0 %v774
        %v851 = vpop.f32.mrb[0].mxu0
        %v852 = vadd.f32 %v755, %v851
        %v853 = vpop.f32.mrb[0].mxu0
        %v854 = vadd.f32 %v755, %v853
        %855 = vmatprep.mubr.f32.mxu0 0.0
        %856 = vmatmul.mubr.f32.gmra.mrb[0].mxu0 %v777
        %v857 = vpop.f32.mrb[0].mxu0
        %v858 = vadd.f32 %v760, %v857
        %v859 = vpop.f32.mrb[0].mxu0
        %v860 = vadd.f32 %v760, %v859
        %861 = vmatprep.mubr.f32.mxu0 0.0
        %862 = vmatmul.mubr.f32.gmra.mrb[0].mxu0 %v780
        %v863 = vpop.f32.mrb[0].mxu0
        %v864 = vadd.f32 %v765, %v863
        %v865 = vpop.f32.mrb[0].mxu0
        %v866 = vadd.f32 %v765, %v865
        %867 = vmatprep.mubr.f32.mxu0 0.0
        %868 = vmatmul.mubr.f32.gmra.mrb[0].mxu0 %v783
        %v869 = vpop.f32.mrb[0].mxu0
        %v870 = vadd.f32 %v770, %v869
        %v871 = vpop.f32.mrb[0].mxu0
        %v872 = vadd.f32 %v770, %v871
        %873 = vdwg.mxu0
        %874 = vst [vmem:[%s242] sm:$0xff] %v852
        %875 = vst [vmem:[%s242 + $0x8] sm:$0xff] %v854
        %876 = vst [vmem:[%s242 + $0x10] sm:$0xff] %v858
        %877 = vst [vmem:[%s242 + $0x18] sm:$0xff] %v860
        %878 = vst [vmem:[%s242 + $0x20] sm:$0xff] %v864
        %879 = vst [vmem:[%s242 + $0x28] sm:$0xff] %v866
        %880 = vst [vmem:[%s242 + $0x30] sm:$0xff] %v870
        %881 = vst [vmem:[%s242 + $0x38] sm:$0xff] %v872
        %s882 = sand.u32 %s153, 1
        %s883 = scalar_lea.sflag [#allocation3], %s882
        %s884 = sand.u32 %s153, 1
        %s885 = smul.addr %s884, 64
        %s886 = scalar_lea.vmem [#allocation2], %s885
        // Predicated region
        $region41: #{_ffn_pallas.1} parent=39 // pred_check
          %p887 = pneg %p163
        $region42: #{_ffn_pallas.1} parent=39 // pred_check_branch
          %889 = sbr.rel (%p887) target = $region44
        $region43: #{_ffn_pallas.1} parent=39 // pred_region
          %s890 = smul.u32 2, %s24
          %s892 = ssub.s32 1024, 1024
          %893 = vsyncadd %s883, %s892
          %s894 = smul.addr %s23, 8
          %s895 = sadd.s32 %s890, %s894
          %s896 = smul.addr %s895, 128
          %s897 = scalar_lea.hbm %s5, %s896
          %s898 = sshll.u32 %s886, 4
          %s899 = int_to_ptr.vmem [resolvable:$true] %s898
          %904 = dma.vmem_to_hbm [thread:$0]  %s899, 1024, %s897, %s883, 256, 256, 16
        $region44: #{_ffn_pallas.1} parent=39 // pred_fallthru
          _
      $region40: #{_ffn_pallas.1} parent=5 // pred_fallthru
        _
      %p905 = scmp.le.s32.totalorder 2, %s14
      // Predicated region
      $region45: #{_ffn_pallas.1} parent=5 // pred_check
        %p906 = pneg %p905
      $region46: #{_ffn_pallas.1} parent=5 // pred_check_branch
        %908 = sbr.rel (%p906) target = $region48
      $region47: #{_ffn_pallas.1} parent=5 // pred_region
        %s909 = ssub.s32 %s14, 2
        // Predicated region
        $region49: #{_ffn_pallas.1} parent=47 // pred_check
          %p910 = pneg %p169
        $region50: #{_ffn_pallas.1} parent=47 // pred_check_branch
          %912 = sbr.rel (%p910) target = $region52
        $region51: #{_ffn_pallas.1} parent=47 // pred_region
          %s913 = sand.u32 %s154, 1
          %s914 = scalar_lea.sflag [#allocation3], %s913
          %s915 = sand.u32 %s154, 1
          %s916 = smul.addr %s915, 64
          %s917 = scalar_lea.vmem [#allocation2], %s916
          %918 = dma.done %s914, 1024
        $region52: #{_ffn_pallas.1} parent=47 // pred_fallthru
          _
      $region48: #{_ffn_pallas.1} parent=5 // pred_fallthru
        _
    $region6: #{_ffn_pallas.1} parent=1 // loop_footer
      %s18 = sadd.s32 1, %s14
    $region7: #{_ffn_pallas.1} parent=1 // loop_footer_branch
      %13 = sbr.rel target = $region3
    $region8: #{_ffn_pallas.1} parent=1 // loop_exit
      _
    %919 = vsyncpa [#allocation3], 1
    %s920 = scalar_lea.sflag [#allocation3], 1
    %921 = vsyncpa %s920, 1

</llo_original>
